<compile_context>
chip_gen: v7x
topology: tpu7x:2x2x1
jax: 0.10.0
libtpu: 0.0.40
codegen_flags: <defaults>
</compile_context>

<pallas_src>
import functools

import jax
import jax.numpy as jnp
import numpy as np
from jax.experimental import pallas as pl
from jax.experimental.pallas import tpu as pltpu


def _mha_kernel(x_ref, wqkv_ref, bqkv_ref, wproj_ref, bproj_ref, o_ref, *,
                num_heads):
    x = x_ref[0]                                    # [N, E], bf16
    N, E = x.shape
    H = num_heads
    D = E // H

    # Fused QKV projection: one [N,E]x[E,3E] bf16 MXU matmul, f32 accumulate.
    qkv = jnp.dot(x, wqkv_ref[...],
                  preferred_element_type=jnp.float32) + bqkv_ref[...]   # [N,3E] f32

    def split_heads(a2d):
        # [N, H*D] -> [H, N, D]: heads become a leading batch axis so the lane
        # axis stays a dense D-wide slab for the batched attention matmuls.
        return jnp.stack([a2d[:, h * D:(h + 1) * D] for h in range(H)], axis=0)

    q = split_heads(qkv[:, 0:E]).astype(jnp.bfloat16)       # scale folded into W_q
    k = split_heads(qkv[:, E:2 * E]).astype(jnp.bfloat16)
    v = split_heads(qkv[:, 2 * E:3 * E]).astype(jnp.bfloat16)

    # Scores, batched over heads; contracts the last dims (no explicit k.T).
    s = jnp.einsum('hqd,hkd->hqk', q, k,
                   preferred_element_type=jnp.float32)      # [H, N, N] f32

    # Softmax over keys, in f32; reciprocal on the EUP instead of a VALU divide.
    s = s - jnp.max(s, axis=-1, keepdims=True)
    p = jnp.exp(s)
    p = p * pl.reciprocal(jnp.sum(p, axis=-1, keepdims=True), approx=True)
    # attn_drop with p=0.0 is the identity; dropout is omitted.

    o = jnp.einsum('hqk,hkd->hqd', p.astype(jnp.bfloat16), v,
                   preferred_element_type=jnp.float32)      # [H, N, D] f32

    # 'b h n d -> b n (h d)': head-major lane concat, then a single dense
    # [N,E]x[E,E] projection matmul (full-E contraction on the MXU; no
    # [H,N,E] f32 intermediate, no cross-head VALU reduction).
    o_cat = jnp.concatenate([o[h] for h in range(H)],
                            axis=-1).astype(jnp.bfloat16)   # [N, E]
    y = jnp.dot(o_cat, wproj_ref[...],
                preferred_element_type=jnp.float32)         # [N, E] f32
    o_ref[0] = (y + bproj_ref[...]).astype(o_ref.dtype)


def multi_head_attention(x, w_qkv, b_qkv, w_proj, b_proj, num_heads):
    """x: [B, N, E]; w_qkv: [3E, E]; b_qkv: [3E]; w_proj: [E, E]; b_proj: [E]."""
    B, N, E = x.shape
    H = num_heads
    D = E // H
    scale = float(E) ** -0.5                        # PyTorch uses emb_size**-0.5
    f32 = jnp.float32

    # Reorder qkv output features from PyTorch's (h, d, qkv) interleave to
    # (qkv, h, d): q|k|v become contiguous E-wide groups, heads D-wide inside.
    w_r = w_qkv.reshape(H, D, 3, E).transpose(2, 0, 1, 3).reshape(3 * E, E)
    b_r = b_qkv.reshape(H, D, 3).transpose(2, 0, 1).reshape(3 * E)

    # Fold the attention scale into the Q projection columns (zero-cost).
    col_scale = jnp.concatenate([jnp.full((E,), scale, f32),
                                 jnp.ones((2 * E,), f32)])
    w_qkv_fused = w_r.T * col_scale[None, :]                 # [E_in, 3E_out]
    b_qkv_fused = (b_r * col_scale)[None, :].astype(f32)     # [1, 3E]

    # Output projection: rows of W^T are indexed by the flat (h*D + d) feature,
    # which matches the head-major concat inside the kernel — no permutation.
    w_proj_t = w_proj.T                                      # [E_in, E_out]
    b_proj_f = b_proj.reshape(1, E).astype(f32)

    # bf16 MXU inputs (accumulation stays f32 inside the kernel).
    x_bf = x.astype(jnp.bfloat16)
    w_qkv_bf = w_qkv_fused.astype(jnp.bfloat16)
    w_proj_bf = w_proj_t.astype(jnp.bfloat16)

    kernel = functools.partial(_mha_kernel, num_heads=H)

    return pl.pallas_call(
        kernel,
        out_shape=jax.ShapeDtypeStruct((B, N, E), x.dtype),
        grid_spec=pltpu.PrefetchScalarGridSpec(
            num_scalar_prefetch=0,
            grid=(B,),
            in_specs=[
                pl.BlockSpec((1, N, E), lambda b: (b, 0, 0)),     # x
                pl.BlockSpec((E, 3 * E), lambda b: (0, 0)),       # fused qkv weight
                pl.BlockSpec((1, 3 * E), lambda b: (0, 0)),       # fused qkv bias
                pl.BlockSpec((E, E), lambda b: (0, 0)),           # proj weight (W^T)
                pl.BlockSpec((1, E), lambda b: (0, 0)),           # proj bias
            ],
            out_specs=pl.BlockSpec((1, N, E), lambda b: (b, 0, 0)),
        ),
        compiler_params=pltpu.CompilerParams(
            dimension_semantics=("parallel",)),
    )(x_bf, w_qkv_bf, b_qkv_fused, w_proj_bf, b_proj_f)


def _reference(x, w_qkv, b_qkv, w_proj, b_proj, H):
    # Pure-JAX mirror of the PyTorch forward (for verification).
    B, N, E = x.shape
    D = E // H
    qkv = x @ w_qkv.T + b_qkv                       # [B, N, 3E]
    qkv = qkv.reshape(B, N, H, D, 3).transpose(4, 0, 2, 1, 3)   # (3, B, H, N, D)
    q, k, v = qkv[0], qkv[1], qkv[2]
    attn = jnp.einsum('bhqd,bhkd->bhqk', q, k) * (float(E) ** -0.5)
    attn = jax.nn.softmax(attn, axis=-1)
    out = jnp.einsum('bhal,bhlv->bhav', attn, v)
    out = out.transpose(0, 2, 1, 3).reshape(B, N, E)
    return out @ w_proj.T + b_proj


if __name__ == "__main__":
    B, N, E, H = 2, 8, 32, 4                        # small shapes; D = 8

    key = jax.random.PRNGKey(0)
    kx, kw1, kb1, kw2, kb2 = jax.random.split(key, 5)
    x = jax.random.normal(kx, (B, N, E), dtype=jnp.float32)
    w_qkv = 0.02 * jax.random.normal(kw1, (3 * E, E), dtype=jnp.float32)
    b_qkv = 0.02 * jax.random.normal(kb1, (3 * E,), dtype=jnp.float32)
    w_proj = 0.02 * jax.random.normal(kw2, (E, E), dtype=jnp.float32)
    b_proj = 0.02 * jax.random.normal(kb2, (E,), dtype=jnp.float32)

    out = multi_head_attention(x, w_qkv, b_qkv, w_proj, b_proj, H)
    out = jax.block_until_ready(out)

    ref = _reference(x, w_qkv, b_qkv, w_proj, b_proj, H)
    # bf16 MXU inputs + approx reciprocal -> relaxed tolerance vs. the f32 ref.
    np.testing.assert_allclose(np.asarray(out), np.asarray(ref),
                               rtol=5e-2, atol=5e-3)
    print("KERNEL_OK")
</pallas_src>

<mosaic_0001>
module attributes {stable_mosaic.version = 11 : i64} {
  func.func @_mha_kernel(%arg0: i32, %arg1: memref<1x8x32xbf16, #tpu.memory_space<vmem>>, %arg2: memref<32x96xbf16, #tpu.memory_space<vmem>>, %arg3: memref<1x96xf32, #tpu.memory_space<vmem>>, %arg4: memref<32x32xbf16, #tpu.memory_space<vmem>>, %arg5: memref<1x32xf32, #tpu.memory_space<vmem>>, %arg6: memref<1x8x32xf32, #tpu.memory_space<vmem>>) attributes {dimension_semantics = [#tpu.dimension_semantics<parallel>], iteration_bounds = array<i64: 2>, scalar_prefetch = 0 : i64, scratch_operands = 0 : i64, tpu.core_type = #tpu.core_type<tc>, window_params = [{transform_indices = @transform_0, window_bounds = array<i64: 1, 8, 32>}, {pipeline_mode = #tpu.pipeline_mode<synchronous>, transform_indices = @transform_1, window_bounds = array<i64: 32, 96>}, {pipeline_mode = #tpu.pipeline_mode<synchronous>, transform_indices = @transform_2, window_bounds = array<i64: 1, 96>}, {pipeline_mode = #tpu.pipeline_mode<synchronous>, transform_indices = @transform_3, window_bounds = array<i64: 32, 32>}, {pipeline_mode = #tpu.pipeline_mode<synchronous>, transform_indices = @transform_4, window_bounds = array<i64: 1, 32>}, {transform_indices = @transform_5, window_bounds = array<i64: 1, 8, 32>}]} {
    %c0 = arith.constant 0 : index
    %c0_0 = arith.constant 0 : index
    %c0_1 = arith.constant 0 : index
    %0 = vector.load %arg1[%c0, %c0_0, %c0_1] : memref<1x8x32xbf16, #tpu.memory_space<vmem>>, vector<1x8x32xbf16>
    %1 = vector.shape_cast %0 : vector<1x8x32xbf16> to vector<8x32xbf16>
    %c0_2 = arith.constant 0 : index
    %c0_3 = arith.constant 0 : index
    %2 = vector.load %arg2[%c0_2, %c0_3] : memref<32x96xbf16, #tpu.memory_space<vmem>>, vector<32x96xbf16>
    %cst = arith.constant dense<0.000000e+00> : vector<8x96xf32>
    %3 = tpu.matmul %1, %2, %cst {dimension_numbers = #tpu.dot_dimension_numbers<[1], [0], [0], [1], [0, 0, 1, 1], [], []>} : vector<8x32xbf16>, vector<32x96xbf16>, vector<8x96xf32> -> vector<8x96xf32>
    %c0_4 = arith.constant 0 : index
    %c0_5 = arith.constant 0 : index
    %4 = vector.load %arg3[%c0_4, %c0_5] : memref<1x96xf32, #tpu.memory_space<vmem>>, vector<1x96xf32>
    %5 = vector.broadcast %4 : vector<1x96xf32> to vector<8x96xf32>
    %6 = arith.addf %3, %5 : vector<8x96xf32>
    %7 = vector.extract_strided_slice %6 {offsets = [0, 0], sizes = [8, 32], strides = [1, 1]} : vector<8x96xf32> to vector<8x32xf32>
    %8 = vector.extract_strided_slice %7 {offsets = [0, 0], sizes = [8, 8], strides = [1, 1]} : vector<8x32xf32> to vector<8x8xf32>
    %9 = vector.extract_strided_slice %7 {offsets = [0, 8], sizes = [8, 8], strides = [1, 1]} : vector<8x32xf32> to vector<8x8xf32>
    %10 = vector.extract_strided_slice %7 {offsets = [0, 16], sizes = [8, 8], strides = [1, 1]} : vector<8x32xf32> to vector<8x8xf32>
    %11 = vector.extract_strided_slice %7 {offsets = [0, 24], sizes = [8, 8], strides = [1, 1]} : vector<8x32xf32> to vector<8x8xf32>
    %12 = vector.shape_cast %8 : vector<8x8xf32> to vector<1x8x8xf32>
    %13 = vector.shape_cast %9 : vector<8x8xf32> to vector<1x8x8xf32>
    %14 = vector.shape_cast %10 : vector<8x8xf32> to vector<1x8x8xf32>
    %15 = vector.shape_cast %11 : vector<8x8xf32> to vector<1x8x8xf32>
    %16 = tpu.concatenate %12, %13, %14, %15 in 0 : vector<1x8x8xf32>, vector<1x8x8xf32>, vector<1x8x8xf32>, vector<1x8x8xf32> -> vector<4x8x8xf32>
    %17 = arith.truncf %16 : vector<4x8x8xf32> to vector<4x8x8xbf16>
    %18 = vector.extract_strided_slice %6 {offsets = [0, 32], sizes = [8, 32], strides = [1, 1]} : vector<8x96xf32> to vector<8x32xf32>
    %19 = vector.extract_strided_slice %18 {offsets = [0, 0], sizes = [8, 8], strides = [1, 1]} : vector<8x32xf32> to vector<8x8xf32>
    %20 = vector.extract_strided_slice %18 {offsets = [0, 8], sizes = [8, 8], strides = [1, 1]} : vector<8x32xf32> to vector<8x8xf32>
    %21 = vector.extract_strided_slice %18 {offsets = [0, 16], sizes = [8, 8], strides = [1, 1]} : vector<8x32xf32> to vector<8x8xf32>
    %22 = vector.extract_strided_slice %18 {offsets = [0, 24], sizes = [8, 8], strides = [1, 1]} : vector<8x32xf32> to vector<8x8xf32>
    %23 = vector.shape_cast %19 : vector<8x8xf32> to vector<1x8x8xf32>
    %24 = vector.shape_cast %20 : vector<8x8xf32> to vector<1x8x8xf32>
    %25 = vector.shape_cast %21 : vector<8x8xf32> to vector<1x8x8xf32>
    %26 = vector.shape_cast %22 : vector<8x8xf32> to vector<1x8x8xf32>
    %27 = tpu.concatenate %23, %24, %25, %26 in 0 : vector<1x8x8xf32>, vector<1x8x8xf32>, vector<1x8x8xf32>, vector<1x8x8xf32> -> vector<4x8x8xf32>
    %28 = arith.truncf %27 : vector<4x8x8xf32> to vector<4x8x8xbf16>
    %29 = vector.extract_strided_slice %6 {offsets = [0, 64], sizes = [8, 32], strides = [1, 1]} : vector<8x96xf32> to vector<8x32xf32>
    %30 = vector.extract_strided_slice %29 {offsets = [0, 0], sizes = [8, 8], strides = [1, 1]} : vector<8x32xf32> to vector<8x8xf32>
    %31 = vector.extract_strided_slice %29 {offsets = [0, 8], sizes = [8, 8], strides = [1, 1]} : vector<8x32xf32> to vector<8x8xf32>
    %32 = vector.extract_strided_slice %29 {offsets = [0, 16], sizes = [8, 8], strides = [1, 1]} : vector<8x32xf32> to vector<8x8xf32>
    %33 = vector.extract_strided_slice %29 {offsets = [0, 24], sizes = [8, 8], strides = [1, 1]} : vector<8x32xf32> to vector<8x8xf32>
    %34 = vector.shape_cast %30 : vector<8x8xf32> to vector<1x8x8xf32>
    %35 = vector.shape_cast %31 : vector<8x8xf32> to vector<1x8x8xf32>
    %36 = vector.shape_cast %32 : vector<8x8xf32> to vector<1x8x8xf32>
    %37 = vector.shape_cast %33 : vector<8x8xf32> to vector<1x8x8xf32>
    %38 = tpu.concatenate %34, %35, %36, %37 in 0 : vector<1x8x8xf32>, vector<1x8x8xf32>, vector<1x8x8xf32>, vector<1x8x8xf32> -> vector<4x8x8xf32>
    %39 = arith.truncf %38 : vector<4x8x8xf32> to vector<4x8x8xbf16>
    "tpu.trace_start"() <{level = 10 : i32, message = "hqd,hkd->hqk"}> : () -> ()
    %cst_6 = arith.constant dense<0.000000e+00> : vector<4x8x8xf32>
    %40 = tpu.matmul %17, %28, %cst_6 {dimension_numbers = #tpu.dot_dimension_numbers<[2], [2], [1], [1], [0, 0, 0, 1, 1, 1], [0], [0]>} : vector<4x8x8xbf16>, vector<4x8x8xbf16>, vector<4x8x8xf32> -> vector<4x8x8xf32>
    "tpu.trace_stop"() : () -> ()
    %cst_7 = arith.constant dense<0xFF800000> : vector<4x8xf32>
    %41 = vector.multi_reduction <maximumf>, %40, %cst_7 [2] : vector<4x8x8xf32> to vector<4x8xf32>
    %42 = vector.shape_cast %41 : vector<4x8xf32> to vector<4x8x1xf32>
    %43 = vector.broadcast %42 : vector<4x8x1xf32> to vector<4x8x8xf32>
    %44 = arith.subf %40, %43 : vector<4x8x8xf32>
    %45 = math.exp %44 : vector<4x8x8xf32>
    %cst_8 = arith.constant dense<0.000000e+00> : vector<4x8xf32>
    %46 = vector.multi_reduction <add>, %45, %cst_8 [2] : vector<4x8x8xf32> to vector<4x8xf32>
    %47 = vector.shape_cast %46 : vector<4x8xf32> to vector<4x8x1xf32>
    %48 = tpu.reciprocal %47 {approx = true} : vector<4x8x1xf32> -> vector<4x8x1xf32>
    %49 = vector.broadcast %48 : vector<4x8x1xf32> to vector<4x8x8xf32>
    %50 = arith.mulf %45, %49 : vector<4x8x8xf32>
    %51 = arith.truncf %50 : vector<4x8x8xf32> to vector<4x8x8xbf16>
    "tpu.trace_start"() <{level = 10 : i32, message = "hqk,hkd->hqd"}> : () -> ()
    %cst_9 = arith.constant dense<0.000000e+00> : vector<4x8x8xf32>
    %52 = tpu.matmul %51, %39, %cst_9 {dimension_numbers = #tpu.dot_dimension_numbers<[2], [1], [1], [2], [0, 0, 0, 1, 1, 2], [0], [0]>} : vector<4x8x8xbf16>, vector<4x8x8xbf16>, vector<4x8x8xf32> -> vector<4x8x8xf32>
    "tpu.trace_stop"() : () -> ()
    %53 = vector.extract_strided_slice %52 {offsets = [0, 0, 0], sizes = [1, 8, 8], strides = [1, 1, 1]} : vector<4x8x8xf32> to vector<1x8x8xf32>
    %54 = vector.shape_cast %53 : vector<1x8x8xf32> to vector<8x8xf32>
    %55 = vector.extract_strided_slice %52 {offsets = [1, 0, 0], sizes = [1, 8, 8], strides = [1, 1, 1]} : vector<4x8x8xf32> to vector<1x8x8xf32>
    %56 = vector.shape_cast %55 : vector<1x8x8xf32> to vector<8x8xf32>
    %57 = vector.extract_strided_slice %52 {offsets = [2, 0, 0], sizes = [1, 8, 8], strides = [1, 1, 1]} : vector<4x8x8xf32> to vector<1x8x8xf32>
    %58 = vector.shape_cast %57 : vector<1x8x8xf32> to vector<8x8xf32>
    %59 = vector.extract_strided_slice %52 {offsets = [3, 0, 0], sizes = [1, 8, 8], strides = [1, 1, 1]} : vector<4x8x8xf32> to vector<1x8x8xf32>
    %60 = vector.shape_cast %59 : vector<1x8x8xf32> to vector<8x8xf32>
    %61 = tpu.concatenate %54, %56, %58, %60 in 1 : vector<8x8xf32>, vector<8x8xf32>, vector<8x8xf32>, vector<8x8xf32> -> vector<8x32xf32>
    %62 = arith.truncf %61 : vector<8x32xf32> to vector<8x32xbf16>
    %c0_10 = arith.constant 0 : index
    %c0_11 = arith.constant 0 : index
    %63 = vector.load %arg4[%c0_10, %c0_11] : memref<32x32xbf16, #tpu.memory_space<vmem>>, vector<32x32xbf16>
    %cst_12 = arith.constant dense<0.000000e+00> : vector<8x32xf32>
    %64 = tpu.matmul %62, %63, %cst_12 {dimension_numbers = #tpu.dot_dimension_numbers<[1], [0], [0], [1], [0, 0, 1, 1], [], []>} : vector<8x32xbf16>, vector<32x32xbf16>, vector<8x32xf32> -> vector<8x32xf32>
    %c0_13 = arith.constant 0 : index
    %c0_14 = arith.constant 0 : index
    %65 = vector.load %arg5[%c0_13, %c0_14] : memref<1x32xf32, #tpu.memory_space<vmem>>, vector<1x32xf32>
    %66 = vector.broadcast %65 : vector<1x32xf32> to vector<8x32xf32>
    %67 = arith.addf %64, %66 : vector<8x32xf32>
    %c0_15 = arith.constant 0 : index
    %c0_16 = arith.constant 0 : index
    %c0_17 = arith.constant 0 : index
    %68 = vector.load %arg6[%c0_15, %c0_16, %c0_17] : memref<1x8x32xf32, #tpu.memory_space<vmem>>, vector<1x8x32xf32>
    %69 = vector.shape_cast %68 : vector<1x8x32xf32> to vector<8x32xf32>
    %70 = vector.shape_cast %67 : vector<8x32xf32> to vector<1x8x32xf32>
    tpu.vector_store %arg6[%c0_15, %c0_16, %c0_17], %70 {strides = array<i32>} : memref<1x8x32xf32, #tpu.memory_space<vmem>>, vector<1x8x32xf32>,
    return
  }
  func.func @transform_0(%arg0: i32) -> (i32, i32, i32) {
    %c0_i32 = arith.constant 0 : i32
    %c0_i32_0 = arith.constant 0 : i32
    %c0_i32_1 = arith.constant 0 : i32
    return %arg0, %c0_i32, %c0_i32_0 : i32, i32, i32
  }
  func.func @transform_1(%arg0: i32) -> (i32, i32) {
    %c0_i32 = arith.constant 0 : i32
    %c0_i32_0 = arith.constant 0 : i32
    %c0_i32_1 = arith.constant 0 : i32
    return %c0_i32, %c0_i32_0 : i32, i32
  }
  func.func @transform_2(%arg0: i32) -> (i32, i32) {
    %c0_i32 = arith.constant 0 : i32
    %c0_i32_0 = arith.constant 0 : i32
    %c0_i32_1 = arith.constant 0 : i32
    return %c0_i32, %c0_i32_0 : i32, i32
  }
  func.func @transform_3(%arg0: i32) -> (i32, i32) {
    %c0_i32 = arith.constant 0 : i32
    %c0_i32_0 = arith.constant 0 : i32
    %c0_i32_1 = arith.constant 0 : i32
    return %c0_i32, %c0_i32_0 : i32, i32
  }
  func.func @transform_4(%arg0: i32) -> (i32, i32) {
    %c0_i32 = arith.constant 0 : i32
    %c0_i32_0 = arith.constant 0 : i32
    %c0_i32_1 = arith.constant 0 : i32
    return %c0_i32, %c0_i32_0 : i32, i32
  }
  func.func @transform_5(%arg0: i32) -> (i32, i32, i32) {
    %c0_i32 = arith.constant 0 : i32
    %c0_i32_0 = arith.constant 0 : i32
    %c0_i32_1 = arith.constant 0 : i32
    return %arg0, %c0_i32, %c0_i32_0 : i32, i32, i32
  }
}

</mosaic_0001>

<llo_original>
// kernel: tpu_custom_call.1
$region0: #{tpu_custom_call.1}
  #allocation0 [shape = 'u32[]', space=smem, size = 0x4, offset = 0x4, fixed_abs, tag = 'smem constant byte address 0x4 - core index']
  #allocation1 [shape = 'u32[144,128]{1,0:T(1,128)}', space=vmem, size = 0x12000, scoped, tag = 'internal scratch']
  %s0 = inlined_call_operand.hbm [shape: bf16[2,8,32], index: 0, kind: input, shape index: {}]
  %s1 = inlined_call_operand.hbm [shape: bf16[32,96], index: 1, kind: input, shape index: {}]
  %s2 = inlined_call_operand.vmem [shape: f32[1,96], index: 2, kind: input, shape index: {}]
  %s3 = inlined_call_operand.hbm [shape: bf16[32,32], index: 3, kind: input, shape index: {}]
  %s4 = inlined_call_operand.vmem [shape: f32[1,32], index: 4, kind: input, shape index: {}]
  %s5 = inlined_call_operand.hbm [shape: f32[2,8,32], index: 5, kind: output, shape index: {}]
  %s6 = sld [smem:[#allocation0]]
  $region65: #{tpu_custom_call.1} parent=0
    _
  %s8 = ssub.s32 1, %s6
  %s9 = scalar_select 0, %s8, %s6
  $region1: #{tpu_custom_call.1} parent=0
    #allocation2 [shape = 'u8[4096]{0}', space=vmem, size = 0x1000, scoped, tag = 'input window, operand 0']
    #allocation3 [shape = 's32[2]{0}', space=sflag, size = 0x8, scoped, tag = 'scoped memory for tpu_custom_call.1']
    #allocation4 [shape = 's32[2]{0}', space=sflag, size = 0x8, scoped, tag = 'scoped memory for tpu_custom_call.1']
    #allocation5 [shape = 'u8[8192]{0}', space=vmem, size = 0x2000, scoped, tag = 'input window, operand 1, single buffered']
    #allocation6 [shape = 's32[1]{0}', space=sflag, size = 0x4, scoped, tag = 'scoped memory for tpu_custom_call.1']
    #allocation7 [shape = 'u8[8192]{0}', space=vmem, size = 0x2000, scoped, tag = 'input window, operand 3, single buffered']
    #allocation8 [shape = 'u8[8192]{0}', space=vmem, size = 0x2000, scoped, tag = 'output window, operand 0']
    %10 = vsyncpa [#allocation3], 0
    %s11 = scalar_lea.sflag [#allocation3], 1
    %12 = vsyncpa %s11, 0
    %13 = vsyncpa [#allocation6], 0
    %14 = vsyncpa [#allocation4], 0
    %s15 = scalar_lea.sflag [#allocation4], 1
    %16 = vsyncpa %s15, 0
    loop: start=0, step=1, limit=4
    $region2: #{tpu_custom_call.1} parent=1 // loop_pre_header
      _
    $region3: #{tpu_custom_call.1} parent=1 // loop_header
      %s18 = sphi 0, %s22
      %p19 = scmp.ge.s32.totalorder %s18, 4
      %s28 = sphi 0, %s30
      %s31 = sphi 0, %s28
      %s32 = sphi 0, %s31
      %s48 = sphi 0, %s32
      %s52 = sphi 0, %s52
      %s54 = sphi 0, %s52
      %s55 = sphi 0, %s54
      %s69 = sphi 0, %s55
      %s73 = sphi 0, %s73
      %s75 = sphi 0, %s73
      %s76 = sphi 0, %s75
      %s90 = sphi 0, %s76
      %s94 = sphi 0, %s94
      %s96 = sphi 0, %s94
      %s97 = sphi 0, %s96
      %s111 = sphi 0, %s97
      %s115 = sphi 0, %s115
      %s117 = sphi 0, %s115
      %s118 = sphi 0, %s117
      %s132 = sphi 0, %s118
      %s138 = sphi 0, %s140
      %s141 = sphi 0, %s138
      %s142 = sphi 0, %s141
      %s158 = sphi 0, %s142
    $region4: #{tpu_custom_call.1} parent=1 // loop_header_branch
      %21 = sbr.rel (%p19) target = $region8
    $region5: #{tpu_custom_call.1} parent=1 // loop_body
      %s23 = ssub.s32 %s18, 1
      %s24 = ssub.s32 %s18, 2
      %s25 = sadd.s32 %s18, 1
      %s26 = ssub.s32 %s18, %s25
      %p27 = scmp.eq.s32.totalorder %s26, 0
      %s29 = sadd.s32 %s28, 1
      %s30 = scalar_select %p27, %s28, %s29
      %p33 = pneg %p27
      %p34 = scmp.eq.s32.totalorder %s18, 1
      %p35 = por %p33, %p34
      %p36 = scmp.ne.s32.totalorder %s28, %s31
      %p37 = scmp.eq.s32.totalorder %s18, 0
      %p38 = por %p36, %p37
      %p39 = scmp.ne.s32.totalorder %s28, %s31
      %p40 = scmp.eq.s32.totalorder %s23, 1
      %p41 = por %p39, %p40
      %p42 = scmp.ne.s32.totalorder %s31, %s32
      %p43 = scmp.eq.s32.totalorder %s23, 0
      %p44 = por %p42, %p43
      %p45 = scmp.ne.s32.totalorder %s31, %s32
      %p46 = scmp.eq.s32.totalorder %s24, 1
      %p47 = por %p45, %p46
      %p49 = scmp.ne.s32.totalorder %s32, %s48
      %p50 = scmp.eq.s32.totalorder %s24, 0
      %p51 = por %p49, %p50
      %s53 = sadd.s32 %s52, 1
      %p56 = scmp.eq.s32.totalorder %s18, 1
      %p57 = scmp.ne.s32.totalorder %s52, %s54
      %p58 = scmp.eq.s32.totalorder %s18, 0
      %p59 = por %p57, %p58
      %p60 = scmp.ne.s32.totalorder %s52, %s54
      %p61 = scmp.eq.s32.totalorder %s23, 1
      %p62 = por %p60, %p61
      %p63 = scmp.ne.s32.totalorder %s54, %s55
      %p64 = scmp.eq.s32.totalorder %s23, 0
      %p65 = por %p63, %p64
      %p66 = scmp.ne.s32.totalorder %s54, %s55
      %p67 = scmp.eq.s32.totalorder %s24, 1
      %p68 = por %p66, %p67
      %p70 = scmp.ne.s32.totalorder %s55, %s69
      %p71 = scmp.eq.s32.totalorder %s24, 0
      %p72 = por %p70, %p71
      %s74 = sadd.s32 %s73, 1
      %p77 = scmp.eq.s32.totalorder %s18, 1
      %p78 = scmp.ne.s32.totalorder %s73, %s75
      %p79 = scmp.eq.s32.totalorder %s18, 0
      %p80 = por %p78, %p79
      %p81 = scmp.ne.s32.totalorder %s73, %s75
      %p82 = scmp.eq.s32.totalorder %s23, 1
      %p83 = por %p81, %p82
      %p84 = scmp.ne.s32.totalorder %s75, %s76
      %p85 = scmp.eq.s32.totalorder %s23, 0
      %p86 = por %p84, %p85
      %p87 = scmp.ne.s32.totalorder %s75, %s76
      %p88 = scmp.eq.s32.totalorder %s24, 1
      %p89 = por %p87, %p88
      %p91 = scmp.ne.s32.totalorder %s76, %s90
      %p92 = scmp.eq.s32.totalorder %s24, 0
      %p93 = por %p91, %p92
      %s95 = sadd.s32 %s94, 1
      %p98 = scmp.eq.s32.totalorder %s18, 1
      %p99 = scmp.ne.s32.totalorder %s94, %s96
      %p100 = scmp.eq.s32.totalorder %s18, 0
      %p101 = por %p99, %p100
      %p102 = scmp.ne.s32.totalorder %s94, %s96
      %p103 = scmp.eq.s32.totalorder %s23, 1
      %p104 = por %p102, %p103
      %p105 = scmp.ne.s32.totalorder %s96, %s97
      %p106 = scmp.eq.s32.totalorder %s23, 0
      %p107 = por %p105, %p106
      %p108 = scmp.ne.s32.totalorder %s96, %s97
      %p109 = scmp.eq.s32.totalorder %s24, 1
      %p110 = por %p108, %p109
      %p112 = scmp.ne.s32.totalorder %s97, %s111
      %p113 = scmp.eq.s32.totalorder %s24, 0
      %p114 = por %p112, %p113
      %s116 = sadd.s32 %s115, 1
      %p119 = scmp.eq.s32.totalorder %s18, 1
      %p120 = scmp.ne.s32.totalorder %s115, %s117
      %p121 = scmp.eq.s32.totalorder %s18, 0
      %p122 = por %p120, %p121
      %p123 = scmp.ne.s32.totalorder %s115, %s117
      %p124 = scmp.eq.s32.totalorder %s23, 1
      %p125 = por %p123, %p124
      %p126 = scmp.ne.s32.totalorder %s117, %s118
      %p127 = scmp.eq.s32.totalorder %s23, 0
      %p128 = por %p126, %p127
      %p129 = scmp.ne.s32.totalorder %s117, %s118
      %p130 = scmp.eq.s32.totalorder %s24, 1
      %p131 = por %p129, %p130
      %p133 = scmp.ne.s32.totalorder %s118, %s132
      %p134 = scmp.eq.s32.totalorder %s24, 0
      %p135 = por %p133, %p134
      %s136 = ssub.s32 %s18, %s25
      %p137 = scmp.eq.s32.totalorder %s136, 0
      %s139 = sadd.s32 %s138, 1
      %s140 = scalar_select %p137, %s138, %s139
      %p143 = pneg %p137
      %p144 = scmp.eq.s32.totalorder %s18, 1
      %p145 = por %p143, %p144
      %p146 = scmp.ne.s32.totalorder %s138, %s141
      %p147 = scmp.eq.s32.totalorder %s18, 0
      %p148 = por %p146, %p147
      %p149 = scmp.ne.s32.totalorder %s138, %s141
      %p150 = scmp.eq.s32.totalorder %s23, 1
      %p151 = por %p149, %p150
      %p152 = scmp.ne.s32.totalorder %s141, %s142
      %p153 = scmp.eq.s32.totalorder %s23, 0
      %p154 = por %p152, %p153
      %p155 = scmp.ne.s32.totalorder %s141, %s142
      %p156 = scmp.eq.s32.totalorder %s24, 1
      %p157 = por %p155, %p156
      %p159 = scmp.ne.s32.totalorder %s142, %s158
      %p160 = scmp.eq.s32.totalorder %s24, 0
      %p161 = por %p159, %p160
      %p162 = scmp.le.s32.totalorder 1, %s18
      %p163 = scmp.lt.s32.totalorder %s18, 3
      %p164 = pnand %p162, %p163
      %p165 = pneg %p164
      // Predicated region
      $region9: #{tpu_custom_call.1} parent=5 // pred_check
        _
      $region10: #{tpu_custom_call.1} parent=5 // pred_check_branch
        %167 = sbr.rel (%p164) target = $region12
      $region11: #{tpu_custom_call.1} parent=5 // pred_region
        %s168 = ssub.s32 %s18, 1
        // Predicated region
        $region13: #{tpu_custom_call.1} parent=11 // pred_check
          %p169 = pneg %p65
        $region14: #{tpu_custom_call.1} parent=11 // pred_check_branch
          %171 = sbr.rel (%p169) target = $region16
        $region15: #{tpu_custom_call.1} parent=11 // pred_region
          %s173 = ssub.s32 256, 256
          %174 = vsyncadd [#allocation6], %s173
          %s175 = sshll.u32 [#allocation5], 4
          %s176 = int_to_ptr.vmem [resolvable:$true] %s175
          %181 = dma.hbm_to_vmem [thread:$0]  %s1, 256, %s176, [#allocation6], 64, 64, 4
        $region16: #{tpu_custom_call.1} parent=11 // pred_fallthru
          _
        // Predicated region
        $region17: #{tpu_custom_call.1} parent=11 // pred_check
          %p182 = pneg %p86
        $region18: #{tpu_custom_call.1} parent=11 // pred_check_branch
          %184 = sbr.rel (%p182) target = $region20
        $region19: #{tpu_custom_call.1} parent=11 // pred_region
          _
        $region20: #{tpu_custom_call.1} parent=11 // pred_fallthru
          _
        // Predicated region
        $region21: #{tpu_custom_call.1} parent=11 // pred_check
          %p185 = pneg %p107
        $region22: #{tpu_custom_call.1} parent=11 // pred_check_branch
          %187 = sbr.rel (%p185) target = $region24
        $region23: #{tpu_custom_call.1} parent=11 // pred_region
          %s189 = ssub.s32 256, 256
          %190 = vsyncadd [#allocation6], %s189
          %s191 = sshll.u32 [#allocation7], 4
          %s192 = int_to_ptr.vmem [resolvable:$true] %s191
          %197 = dma.hbm_to_vmem [thread:$0]  %s3, 256, %s192, [#allocation6], 64, 64, 4
        $region24: #{tpu_custom_call.1} parent=11 // pred_fallthru
          _
        // Predicated region
        $region25: #{tpu_custom_call.1} parent=11 // pred_check
          %p198 = pneg %p128
        $region26: #{tpu_custom_call.1} parent=11 // pred_check_branch
          %200 = sbr.rel (%p198) target = $region28
        $region27: #{tpu_custom_call.1} parent=11 // pred_region
          _
        $region28: #{tpu_custom_call.1} parent=11 // pred_fallthru
          _
      $region12: #{tpu_custom_call.1} parent=5 // pred_fallthru
        _
      %p201 = scmp.lt.s32.totalorder %s18, 2
      // Predicated region
      $region29: #{tpu_custom_call.1} parent=5 // pred_check
        %p202 = pneg %p201
      $region30: #{tpu_custom_call.1} parent=5 // pred_check_branch
        %204 = sbr.rel (%p202) target = $region32
      $region31: #{tpu_custom_call.1} parent=5 // pred_region
        // Predicated region
        $region33: #{tpu_custom_call.1} parent=31 // pred_check
          %p205 = pneg %p38
        $region34: #{tpu_custom_call.1} parent=31 // pred_check_branch
          %207 = sbr.rel (%p205) target = $region36
        $region35: #{tpu_custom_call.1} parent=31 // pred_region
          %s208 = sand.u32 %s28, 1
          %s209 = scalar_lea.sflag [#allocation3], %s208
          %s210 = sand.u32 %s28, 1
          %s211 = smul.addr %s210, 4
          %s212 = scalar_lea.vmem [#allocation2], %s211
          %s214 = ssub.s32 64, 64
          %215 = vsyncadd %s209, %s214
          %s216 = smul.addr %s18, 64
          %s217 = scalar_lea.hbm %s0, %s216
          %s219 = sshll.u32 %s212, 4
          %s220 = int_to_ptr.vmem [resolvable:$true] %s219
          %222 = dma.hbm_to_vmem [thread:$0]  %s217, 64, %s220, %s209
        $region36: #{tpu_custom_call.1} parent=31 // pred_fallthru
          _
      $region32: #{tpu_custom_call.1} parent=5 // pred_fallthru
        _
      %p223 = scmp.le.s32.totalorder 1, %s18
      %p224 = scmp.lt.s32.totalorder %s18, 3
      %p225 = pnand %p223, %p224
      %p226 = pneg %p225
      // Predicated region
      $region37: #{tpu_custom_call.1} parent=5 // pred_check
        _
      $region38: #{tpu_custom_call.1} parent=5 // pred_check_branch
        %228 = sbr.rel (%p225) target = $region40
      $region39: #{tpu_custom_call.1} parent=5 // pred_region
        %s229 = ssub.s32 %s18, 1
        %s230 = sand.u32 %s31, 1
        %s231 = scalar_lea.sflag [#allocation3], %s230
        %s232 = sand.u32 %s31, 1
        %s233 = smul.addr %s232, 4
        %s234 = scalar_lea.vmem [#allocation2], %s233
        // Predicated region
        $region41: #{tpu_custom_call.1} parent=39 // pred_check
          %p235 = pneg %p44
        $region42: #{tpu_custom_call.1} parent=39 // pred_check_branch
          %237 = sbr.rel (%p235) target = $region44
        $region43: #{tpu_custom_call.1} parent=39 // pred_region
          %238 = dma.done %s231, 64
        $region44: #{tpu_custom_call.1} parent=39 // pred_fallthru
          _
        // Predicated region
        $region45: #{tpu_custom_call.1} parent=39 // pred_check
          %p239 = pneg %p65
        $region46: #{tpu_custom_call.1} parent=39 // pred_check_branch
          %241 = sbr.rel (%p239) target = $region48
        $region47: #{tpu_custom_call.1} parent=39 // pred_region
          %242 = dma.done [#allocation6], 256
        $region48: #{tpu_custom_call.1} parent=39 // pred_fallthru
          _
        // Predicated region
        $region49: #{tpu_custom_call.1} parent=39 // pred_check
          %p243 = pneg %p107
        $region50: #{tpu_custom_call.1} parent=39 // pred_check_branch
          %245 = sbr.rel (%p243) target = $region52
        $region51: #{tpu_custom_call.1} parent=39 // pred_region
          %246 = dma.done [#allocation6], 256
        $region52: #{tpu_custom_call.1} parent=39 // pred_fallthru
          _
        %s247 = sand.u32 %s31, 1
        %s248 = scalar_lea.sflag [#allocation3], %s247
        %s249 = sand.u32 %s31, 1
        %s250 = smul.addr %s249, 4
        %s251 = scalar_lea.vmem [#allocation2], %s250
        %p252 = pneg %p44
        %p253 = pneg %p41
        %p254 = pneg %p65
        %p255 = pneg %p62
        %p256 = pneg %p86
        %p257 = pneg %p83
        %p258 = pneg %p107
        %p259 = pneg %p104
        %p260 = pneg %p128
        %p261 = pneg %p125
        %p262 = pneg %p154
        %p263 = pneg %p151
        %s264 = sand.u32 %s141, 1
        %s265 = scalar_lea.sflag [#allocation4], %s264
        %s266 = sand.u32 %s141, 1
        %s267 = smul.addr %s266, 8
        %s268 = scalar_lea.vmem [#allocation8], %s267
        %v270 = vld [vmem:[%s234] sm:$0xf]
        %v271 = vld [vmem:[#allocation5] sm:$0xf]
        %v272 = vld [vmem:[#allocation5 + $0x4] sm:$0xf]
        %v273 = vld [vmem:[#allocation5 + $0x8] sm:$0xf]
        %v274 = vld [vmem:[#allocation5 + $0xc] sm:$0xf]
        %v275 = vld [vmem:[%s2] sm:$0x1]
        %v277 = vlaneseq
        %v278 = vshrl.u32 %v277, 7
        %v279 = vsub.s32 0, %v278
        %v280 = vrot.slane %v275, %v279
        %v286 = vunpack.c.l.b16 %v271
        %v287 = vunpack.c.l.b16 %v272
        %v288 = vunpack.c.l.b16 %v273
        %v289 = vunpack.c.l.b16 %v274
        %v290 = vpack.c.b16 %v287, %v286
        %v291 = vpack.c.b16 %v289, %v288
        %vm294 = vcmask 261120
        %v296 = vsel %vm294, %v270, 0
        %298 = vmatprep.subr.bf16.mxu0 0
        %299 = vmatpush1.bf16.msra.mxu0 %v290
        %300 = vmatprep.subr.bf16.mxu0 0
        %301 = vmatpush1.bf16.msra.mxu0 %v291
        %302 = vmatprep.subr.bf16.mxu0 0
        %303 = vmatpush1.bf16.msra.mxu0 0
        %304 = vmatprep.subr.bf16.mxu0 0
        %305 = vmatpush1.bf16.msra.mxu0 0
        %306 = vmatprep.subr.bf16.mxu0 0
        %307 = vmatpush1.bf16.msra.mxu0 0
        %308 = vmatprep.subr.bf16.mxu0 0
        %309 = vmatpush1.bf16.msra.mxu0 0
        %310 = vmatprep.subr.bf16.mxu0 0
        %311 = vmatpush1.bf16.msra.mxu0 0
        %312 = vmatprep.subr.bf16.mxu0 0
        %313 = vmatpush1.bf16.msra.mxu0 0
        %314 = vmatprep.subr.bf16.mxu0 0
        %315 = vmatpush1.bf16.msra.mxu0 0
        %316 = vmatprep.subr.bf16.mxu0 0
        %317 = vmatpush1.bf16.msra.mxu0 0
        %318 = vmatprep.subr.bf16.mxu0 0
        %319 = vmatpush1.bf16.msra.mxu0 0
        %320 = vmatprep.subr.bf16.mxu0 0
        %321 = vmatpush1.bf16.msra.mxu0 0
        %322 = vmatprep.subr.bf16.mxu0 0
        %323 = vmatpush1.bf16.msra.mxu0 0
        %324 = vmatprep.subr.bf16.mxu0 0
        %325 = vmatpush1.bf16.msra.mxu0 0
        %326 = vmatprep.subr.bf16.mxu0 0
        %327 = vmatpush1.bf16.msra.mxu0 0
        %328 = vmatprep.subr.bf16.mxu0 0
        %329 = vmatpush1.bf16.msra.mxu0 0
        %330 = vmatprep.mubr.bf16.mxu0 0
        %331 = vmatmul.mubr.bf16.gmra.mrb[0].mxu0 %v296
        %v332 = vpop.f32.mrb[0].mxu0
        %v333 = vadd.f32 %v280, %v332
        %v334 = vpop.f32.mrb[0].mxu0
        %v335 = vpop.f32.mrb[0].mxu0
        %v336 = vpop.f32.mrb[0].mxu0
        %337 = vdwg.mxu0
        %339 = vrot.lane.b32.xlu0 %v333, 120
        %v340 = vpop.permute.xlu0 %339
        %342 = vrot.lane.b32.xlu0 %v333, 112
        %v343 = vpop.permute.xlu0 %342
        %345 = vrot.lane.b32.xlu0 %v333, 104
        %v346 = vpop.permute.xlu0 %345
        %v348 = vpack.c.bf16 %v333, %v333
        %v349 = vpack.c.bf16 %v340, %v340
        %v350 = vpack.c.bf16 %v343, %v343
        %v351 = vpack.c.bf16 %v346, %v346
        %353 = vrot.lane.b32.xlu0 %v348, 96
        %v354 = vpop.permute.xlu0 %353
        %vm355 = vcmask 64512
        %v357 = vsel %vm355, %v348, 0
        %v360 = vsel %vm355, %v354, 0
        %362 = vmatprep.subr.bf16.mxu0 0
        %363 = vmatpush1.bf16.xpose.msra.mxu0 %v360
        %364 = vmatprep.subr.bf16.mxu0 0
        %365 = vmatpush1.bf16.xpose.msra.mxu0 0
        %366 = vmatprep.subr.bf16.mxu0 0
        %367 = vmatpush1.bf16.xpose.msra.mxu0 0
        %368 = vmatprep.subr.bf16.mxu0 0
        %369 = vmatpush1.bf16.xpose.msra.mxu0 0
        %370 = vmatprep.subr.bf16.mxu0 0
        %371 = vmatpush1.bf16.xpose.msra.mxu0 0
        %372 = vmatprep.subr.bf16.mxu0 0
        %373 = vmatpush1.bf16.xpose.msra.mxu0 0
        %374 = vmatprep.subr.bf16.mxu0 0
        %375 = vmatpush1.bf16.xpose.msra.mxu0 0
        %376 = vmatprep.subr.bf16.mxu0 0
        %377 = vmatpush1.bf16.xpose.msra.mxu0 0
        %378 = vmatprep.subr.bf16.mxu0 0
        %379 = vmatpush1.bf16.xpose.msra.mxu0 0
        %380 = vmatprep.subr.bf16.mxu0 0
        %381 = vmatpush1.bf16.xpose.msra.mxu0 0
        %382 = vmatprep.subr.bf16.mxu0 0
        %383 = vmatpush1.bf16.xpose.msra.mxu0 0
        %384 = vmatprep.subr.bf16.mxu0 0
        %385 = vmatpush1.bf16.xpose.msra.mxu0 0
        %386 = vmatprep.subr.bf16.mxu0 0
        %387 = vmatpush1.bf16.xpose.msra.mxu0 0
        %388 = vmatprep.subr.bf16.mxu0 0
        %389 = vmatpush1.bf16.xpose.msra.mxu0 0
        %390 = vmatprep.subr.bf16.mxu0 0
        %391 = vmatpush1.bf16.xpose.msra.mxu0 0
        %392 = vmatprep.subr.bf16.mxu0 0
        %393 = vmatpush1.bf16.xpose.msra.mxu0 0
        %394 = vmatprep.mubr.bf16.mxu0 0
        %395 = vmatmul.mubr.bf16.gmra.mrb[0].mxu0 %v357
        %v396 = vpop.f32.mrb[0].mxu0
        %v397 = vadd.f32 0.0, %v396
        %v398 = vpop.f32.mrb[0].mxu0
        %v399 = vpop.f32.mrb[0].mxu0
        %v400 = vpop.f32.mrb[0].mxu0
        %401 = vdwg.mxu0
        %403 = vrot.lane.b32.xlu0 %v349, 96
        %v404 = vpop.permute.xlu0 %403
        %v406 = vsel %vm355, %v349, 0
        %v409 = vsel %vm355, %v404, 0
        %411 = vmatprep.subr.bf16.mxu0 0
        %412 = vmatpush1.bf16.xpose.msra.mxu0 %v409
        %413 = vmatprep.subr.bf16.mxu0 0
        %414 = vmatpush1.bf16.xpose.msra.mxu0 0
        %415 = vmatprep.subr.bf16.mxu0 0
        %416 = vmatpush1.bf16.xpose.msra.mxu0 0
        %417 = vmatprep.subr.bf16.mxu0 0
        %418 = vmatpush1.bf16.xpose.msra.mxu0 0
        %419 = vmatprep.subr.bf16.mxu0 0
        %420 = vmatpush1.bf16.xpose.msra.mxu0 0
        %421 = vmatprep.subr.bf16.mxu0 0
        %422 = vmatpush1.bf16.xpose.msra.mxu0 0
        %423 = vmatprep.subr.bf16.mxu0 0
        %424 = vmatpush1.bf16.xpose.msra.mxu0 0
        %425 = vmatprep.subr.bf16.mxu0 0
        %426 = vmatpush1.bf16.xpose.msra.mxu0 0
        %427 = vmatprep.subr.bf16.mxu0 0
        %428 = vmatpush1.bf16.xpose.msra.mxu0 0
        %429 = vmatprep.subr.bf16.mxu0 0
        %430 = vmatpush1.bf16.xpose.msra.mxu0 0
        %431 = vmatprep.subr.bf16.mxu0 0
        %432 = vmatpush1.bf16.xpose.msra.mxu0 0
        %433 = vmatprep.subr.bf16.mxu0 0
        %434 = vmatpush1.bf16.xpose.msra.mxu0 0
        %435 = vmatprep.subr.bf16.mxu0 0
        %436 = vmatpush1.bf16.xpose.msra.mxu0 0
        %437 = vmatprep.subr.bf16.mxu0 0
        %438 = vmatpush1.bf16.xpose.msra.mxu0 0
        %439 = vmatprep.subr.bf16.mxu0 0
        %440 = vmatpush1.bf16.xpose.msra.mxu0 0
        %441 = vmatprep.subr.bf16.mxu0 0
        %442 = vmatpush1.bf16.xpose.msra.mxu0 0
        %443 = vmatprep.mubr.bf16.mxu0 0
        %444 = vmatmul.mubr.bf16.gmra.mrb[0].mxu0 %v406
        %v445 = vpop.f32.mrb[0].mxu0
        %v446 = vadd.f32 0.0, %v445
        %v447 = vpop.f32.mrb[0].mxu0
        %v448 = vpop.f32.mrb[0].mxu0
        %v449 = vpop.f32.mrb[0].mxu0
        %450 = vdwg.mxu0
        %452 = vrot.lane.b32.xlu0 %v350, 96
        %v453 = vpop.permute.xlu0 %452
        %v455 = vsel %vm355, %v350, 0
        %v458 = vsel %vm355, %v453, 0
        %460 = vmatprep.subr.bf16.mxu0 0
        %461 = vmatpush1.bf16.xpose.msra.mxu0 %v458
        %462 = vmatprep.subr.bf16.mxu0 0
        %463 = vmatpush1.bf16.xpose.msra.mxu0 0
        %464 = vmatprep.subr.bf16.mxu0 0
        %465 = vmatpush1.bf16.xpose.msra.mxu0 0
        %466 = vmatprep.subr.bf16.mxu0 0
        %467 = vmatpush1.bf16.xpose.msra.mxu0 0
        %468 = vmatprep.subr.bf16.mxu0 0
        %469 = vmatpush1.bf16.xpose.msra.mxu0 0
        %470 = vmatprep.subr.bf16.mxu0 0
        %471 = vmatpush1.bf16.xpose.msra.mxu0 0
        %472 = vmatprep.subr.bf16.mxu0 0
        %473 = vmatpush1.bf16.xpose.msra.mxu0 0
        %474 = vmatprep.subr.bf16.mxu0 0
        %475 = vmatpush1.bf16.xpose.msra.mxu0 0
        %476 = vmatprep.subr.bf16.mxu0 0
        %477 = vmatpush1.bf16.xpose.msra.mxu0 0
        %478 = vmatprep.subr.bf16.mxu0 0
        %479 = vmatpush1.bf16.xpose.msra.mxu0 0
        %480 = vmatprep.subr.bf16.mxu0 0
        %481 = vmatpush1.bf16.xpose.msra.mxu0 0
        %482 = vmatprep.subr.bf16.mxu0 0
        %483 = vmatpush1.bf16.xpose.msra.mxu0 0
        %484 = vmatprep.subr.bf16.mxu0 0
        %485 = vmatpush1.bf16.xpose.msra.mxu0 0
        %486 = vmatprep.subr.bf16.mxu0 0
        %487 = vmatpush1.bf16.xpose.msra.mxu0 0
        %488 = vmatprep.subr.bf16.mxu0 0
        %489 = vmatpush1.bf16.xpose.msra.mxu0 0
        %490 = vmatprep.subr.bf16.mxu0 0
        %491 = vmatpush1.bf16.xpose.msra.mxu0 0
        %492 = vmatprep.mubr.bf16.mxu0 0
        %493 = vmatmul.mubr.bf16.gmra.mrb[0].mxu0 %v455
        %v494 = vpop.f32.mrb[0].mxu0
        %v495 = vadd.f32 0.0, %v494
        %v496 = vpop.f32.mrb[0].mxu0
        %v497 = vpop.f32.mrb[0].mxu0
        %v498 = vpop.f32.mrb[0].mxu0
        %499 = vdwg.mxu0
        %501 = vrot.lane.b32.xlu0 %v351, 96
        %v502 = vpop.permute.xlu0 %501
        %v504 = vsel %vm355, %v351, 0
        %v507 = vsel %vm355, %v502, 0
        %509 = vmatprep.subr.bf16.mxu0 0
        %510 = vmatpush1.bf16.xpose.msra.mxu0 %v507
        %511 = vmatprep.subr.bf16.mxu0 0
        %512 = vmatpush1.bf16.xpose.msra.mxu0 0
        %513 = vmatprep.subr.bf16.mxu0 0
        %514 = vmatpush1.bf16.xpose.msra.mxu0 0
        %515 = vmatprep.subr.bf16.mxu0 0
        %516 = vmatpush1.bf16.xpose.msra.mxu0 0
        %517 = vmatprep.subr.bf16.mxu0 0
        %518 = vmatpush1.bf16.xpose.msra.mxu0 0
        %519 = vmatprep.subr.bf16.mxu0 0
        %520 = vmatpush1.bf16.xpose.msra.mxu0 0
        %521 = vmatprep.subr.bf16.mxu0 0
        %522 = vmatpush1.bf16.xpose.msra.mxu0 0
        %523 = vmatprep.subr.bf16.mxu0 0
        %524 = vmatpush1.bf16.xpose.msra.mxu0 0
        %525 = vmatprep.subr.bf16.mxu0 0
        %526 = vmatpush1.bf16.xpose.msra.mxu0 0
        %527 = vmatprep.subr.bf16.mxu0 0
        %528 = vmatpush1.bf16.xpose.msra.mxu0 0
        %529 = vmatprep.subr.bf16.mxu0 0
        %530 = vmatpush1.bf16.xpose.msra.mxu0 0
        %531 = vmatprep.subr.bf16.mxu0 0
        %532 = vmatpush1.bf16.xpose.msra.mxu0 0
        %533 = vmatprep.subr.bf16.mxu0 0
        %534 = vmatpush1.bf16.xpose.msra.mxu0 0
        %535 = vmatprep.subr.bf16.mxu0 0
        %536 = vmatpush1.bf16.xpose.msra.mxu0 0
        %537 = vmatprep.subr.bf16.mxu0 0
        %538 = vmatpush1.bf16.xpose.msra.mxu0 0
        %539 = vmatprep.subr.bf16.mxu0 0
        %540 = vmatpush1.bf16.xpose.msra.mxu0 0
        %541 = vmatprep.mubr.bf16.mxu0 0
        %542 = vmatmul.mubr.bf16.gmra.mrb[0].mxu0 %v504
        %v543 = vpop.f32.mrb[0].mxu0
        %v544 = vadd.f32 0.0, %v543
        %v545 = vpop.f32.mrb[0].mxu0
        %v546 = vpop.f32.mrb[0].mxu0
        %v547 = vpop.f32.mrb[0].mxu0
        %548 = vdwg.mxu0
        %v549 = vsel %vm355, %v397, -inf
        %550 = vmax.xlane.f32.xlu0 %v549
        %v551 = vpop.xlane.xlu0 %550
        %v552 = vsel %vm355, %v446, -inf
        %553 = vmax.xlane.f32.xlu0 %v552
        %v554 = vpop.xlane.xlu0 %553
        %v555 = vsel %vm355, %v495, -inf
        %556 = vmax.xlane.f32.xlu0 %v555
        %v557 = vpop.xlane.xlu0 %556
        %v558 = vsel %vm355, %v544, -inf
        %559 = vmax.xlane.f32.xlu0 %v558
        %v560 = vpop.xlane.xlu0 %559
        %v561 = vsub.f32 %v397, %v551
        %v562 = vsub.f32 %v446, %v554
        %v563 = vsub.f32 %v495, %v557
        %v564 = vsub.f32 %v544, %v560
        %v565 = vmul.f32 %v561, 1.442695
        %v566 = vpow.pop %v565
        %v567 = vmul.f32 %v562, 1.442695
        %v568 = vpow.pop %v567
        %v569 = vmul.f32 %v563, 1.442695
        %v570 = vpow.pop %v569
        %v571 = vmul.f32 %v564, 1.442695
        %v572 = vpow.pop %v571
        %v573 = vsel %vm355, %v566, 0.0
        %574 = vadd.xlane.f32.xlu0 %v573
        %v575 = vpop.xlane.xlu0 %574
        %v576 = vsel %vm355, %v568, 0.0
        %577 = vadd.xlane.f32.xlu0 %v576
        %v578 = vpop.xlane.xlu0 %577
        %v579 = vsel %vm355, %v570, 0.0
        %580 = vadd.xlane.f32.xlu0 %v579
        %v581 = vpop.xlane.xlu0 %580
        %v582 = vsel %vm355, %v572, 0.0
        %583 = vadd.xlane.f32.xlu0 %v582
        %v584 = vpop.xlane.xlu0 %583
        %v585 = vrcp.pop %v575
        %v586 = vrcp.pop %v578
        %v587 = vrcp.pop %v581
        %v588 = vrcp.pop %v584
        %v589 = vmul.f32 %v566, %v585
        %v590 = vmul.f32 %v568, %v586
        %v591 = vmul.f32 %v570, %v587
        %v592 = vmul.f32 %v572, %v588
        %v593 = vpack.c.bf16 %v589, %v589
        %v594 = vpack.c.bf16 %v590, %v590
        %v595 = vpack.c.bf16 %v591, %v591
        %v596 = vpack.c.bf16 %v592, %v592
        %597 = vrot.lane.b32.xlu0 %v348, 64
        %v598 = vpop.permute.xlu0 %597
        %v600 = vsel %vm355, %v593, 0
        %vm602 = vcmask 1043456
        %v604 = vsel %vm602, %v598, 0
        %606 = vmatprep.subr.bf16.mxu0 0
        %607 = vmatpush1.bf16.msra.mxu0 %v604
        %608 = vmatprep.subr.bf16.mxu0 0
        %609 = vmatpush1.bf16.msra.mxu0 0
        %610 = vmatprep.subr.bf16.mxu0 0
        %611 = vmatpush1.bf16.msra.mxu0 0
        %612 = vmatprep.subr.bf16.mxu0 0
        %613 = vmatpush1.bf16.msra.mxu0 0
        %614 = vmatprep.subr.bf16.mxu0 0
        %615 = vmatpush1.bf16.msra.mxu0 0
        %616 = vmatprep.subr.bf16.mxu0 0
        %617 = vmatpush1.bf16.msra.mxu0 0
        %618 = vmatprep.subr.bf16.mxu0 0
        %619 = vmatpush1.bf16.msra.mxu0 0
        %620 = vmatprep.subr.bf16.mxu0 0
        %621 = vmatpush1.bf16.msra.mxu0 0
        %622 = vmatprep.subr.bf16.mxu0 0
        %623 = vmatpush1.bf16.msra.mxu0 0
        %624 = vmatprep.subr.bf16.mxu0 0
        %625 = vmatpush1.bf16.msra.mxu0 0
        %626 = vmatprep.subr.bf16.mxu0 0
        %627 = vmatpush1.bf16.msra.mxu0 0
        %628 = vmatprep.subr.bf16.mxu0 0
        %629 = vmatpush1.bf16.msra.mxu0 0
        %630 = vmatprep.subr.bf16.mxu0 0
        %631 = vmatpush1.bf16.msra.mxu0 0
        %632 = vmatprep.subr.bf16.mxu0 0
        %633 = vmatpush1.bf16.msra.mxu0 0
        %634 = vmatprep.subr.bf16.mxu0 0
        %635 = vmatpush1.bf16.msra.mxu0 0
        %636 = vmatprep.subr.bf16.mxu0 0
        %637 = vmatpush1.bf16.msra.mxu0 0
        %638 = vmatprep.mubr.bf16.mxu0 0
        %639 = vmatmul.mubr.bf16.gmra.mrb[0].mxu0 %v600
        %v640 = vpop.f32.mrb[0].mxu0
        %v641 = vadd.f32 0.0, %v640
        %v642 = vpop.f32.mrb[0].mxu0
        %v643 = vpop.f32.mrb[0].mxu0
        %v644 = vpop.f32.mrb[0].mxu0
        %645 = vdwg.mxu0
        %646 = vrot.lane.b32.xlu0 %v349, 64
        %v647 = vpop.permute.xlu0 %646
        %v649 = vsel %vm355, %v594, 0
        %v652 = vsel %vm602, %v647, 0
        %654 = vmatprep.subr.bf16.mxu0 0
        %655 = vmatpush1.bf16.msra.mxu0 %v652
        %656 = vmatprep.subr.bf16.mxu0 0
        %657 = vmatpush1.bf16.msra.mxu0 0
        %658 = vmatprep.subr.bf16.mxu0 0
        %659 = vmatpush1.bf16.msra.mxu0 0
        %660 = vmatprep.subr.bf16.mxu0 0
        %661 = vmatpush1.bf16.msra.mxu0 0
        %662 = vmatprep.subr.bf16.mxu0 0
        %663 = vmatpush1.bf16.msra.mxu0 0
        %664 = vmatprep.subr.bf16.mxu0 0
        %665 = vmatpush1.bf16.msra.mxu0 0
        %666 = vmatprep.subr.bf16.mxu0 0
        %667 = vmatpush1.bf16.msra.mxu0 0
        %668 = vmatprep.subr.bf16.mxu0 0
        %669 = vmatpush1.bf16.msra.mxu0 0
        %670 = vmatprep.subr.bf16.mxu0 0
        %671 = vmatpush1.bf16.msra.mxu0 0
        %672 = vmatprep.subr.bf16.mxu0 0
        %673 = vmatpush1.bf16.msra.mxu0 0
        %674 = vmatprep.subr.bf16.mxu0 0
        %675 = vmatpush1.bf16.msra.mxu0 0
        %676 = vmatprep.subr.bf16.mxu0 0
        %677 = vmatpush1.bf16.msra.mxu0 0
        %678 = vmatprep.subr.bf16.mxu0 0
        %679 = vmatpush1.bf16.msra.mxu0 0
        %680 = vmatprep.subr.bf16.mxu0 0
        %681 = vmatpush1.bf16.msra.mxu0 0
        %682 = vmatprep.subr.bf16.mxu0 0
        %683 = vmatpush1.bf16.msra.mxu0 0
        %684 = vmatprep.subr.bf16.mxu0 0
        %685 = vmatpush1.bf16.msra.mxu0 0
        %686 = vmatprep.mubr.bf16.mxu0 0
        %687 = vmatmul.mubr.bf16.gmra.mrb[0].mxu0 %v649
        %v688 = vpop.f32.mrb[0].mxu0
        %v689 = vadd.f32 0.0, %v688
        %v690 = vpop.f32.mrb[0].mxu0
        %v691 = vpop.f32.mrb[0].mxu0
        %v692 = vpop.f32.mrb[0].mxu0
        %693 = vdwg.mxu0
        %694 = vrot.lane.b32.xlu0 %v350, 64
        %v695 = vpop.permute.xlu0 %694
        %v697 = vsel %vm355, %v595, 0
        %v700 = vsel %vm602, %v695, 0
        %702 = vmatprep.subr.bf16.mxu0 0
        %703 = vmatpush1.bf16.msra.mxu0 %v700
        %704 = vmatprep.subr.bf16.mxu0 0
        %705 = vmatpush1.bf16.msra.mxu0 0
        %706 = vmatprep.subr.bf16.mxu0 0
        %707 = vmatpush1.bf16.msra.mxu0 0
        %708 = vmatprep.subr.bf16.mxu0 0
        %709 = vmatpush1.bf16.msra.mxu0 0
        %710 = vmatprep.subr.bf16.mxu0 0
        %711 = vmatpush1.bf16.msra.mxu0 0
        %712 = vmatprep.subr.bf16.mxu0 0
        %713 = vmatpush1.bf16.msra.mxu0 0
        %714 = vmatprep.subr.bf16.mxu0 0
        %715 = vmatpush1.bf16.msra.mxu0 0
        %716 = vmatprep.subr.bf16.mxu0 0
        %717 = vmatpush1.bf16.msra.mxu0 0
        %718 = vmatprep.subr.bf16.mxu0 0
        %719 = vmatpush1.bf16.msra.mxu0 0
        %720 = vmatprep.subr.bf16.mxu0 0
        %721 = vmatpush1.bf16.msra.mxu0 0
        %722 = vmatprep.subr.bf16.mxu0 0
        %723 = vmatpush1.bf16.msra.mxu0 0
        %724 = vmatprep.subr.bf16.mxu0 0
        %725 = vmatpush1.bf16.msra.mxu0 0
        %726 = vmatprep.subr.bf16.mxu0 0
        %727 = vmatpush1.bf16.msra.mxu0 0
        %728 = vmatprep.subr.bf16.mxu0 0
        %729 = vmatpush1.bf16.msra.mxu0 0
        %730 = vmatprep.subr.bf16.mxu0 0
        %731 = vmatpush1.bf16.msra.mxu0 0
        %732 = vmatprep.subr.bf16.mxu0 0
        %733 = vmatpush1.bf16.msra.mxu0 0
        %734 = vmatprep.mubr.bf16.mxu0 0
        %735 = vmatmul.mubr.bf16.gmra.mrb[0].mxu0 %v697
        %v736 = vpop.f32.mrb[0].mxu0
        %v737 = vadd.f32 0.0, %v736
        %v738 = vpop.f32.mrb[0].mxu0
        %v739 = vpop.f32.mrb[0].mxu0
        %v740 = vpop.f32.mrb[0].mxu0
        %741 = vdwg.mxu0
        %742 = vrot.lane.b32.xlu0 %v351, 64
        %v743 = vpop.permute.xlu0 %742
        %v745 = vsel %vm355, %v596, 0
        %v748 = vsel %vm602, %v743, 0
        %750 = vmatprep.subr.bf16.mxu0 0
        %751 = vmatpush1.bf16.msra.mxu0 %v748
        %752 = vmatprep.subr.bf16.mxu0 0
        %753 = vmatpush1.bf16.msra.mxu0 0
        %754 = vmatprep.subr.bf16.mxu0 0
        %755 = vmatpush1.bf16.msra.mxu0 0
        %756 = vmatprep.subr.bf16.mxu0 0
        %757 = vmatpush1.bf16.msra.mxu0 0
        %758 = vmatprep.subr.bf16.mxu0 0
        %759 = vmatpush1.bf16.msra.mxu0 0
        %760 = vmatprep.subr.bf16.mxu0 0
        %761 = vmatpush1.bf16.msra.mxu0 0
        %762 = vmatprep.subr.bf16.mxu0 0
        %763 = vmatpush1.bf16.msra.mxu0 0
        %764 = vmatprep.subr.bf16.mxu0 0
        %765 = vmatpush1.bf16.msra.mxu0 0
        %766 = vmatprep.subr.bf16.mxu0 0
        %767 = vmatpush1.bf16.msra.mxu0 0
        %768 = vmatprep.subr.bf16.mxu0 0
        %769 = vmatpush1.bf16.msra.mxu0 0
        %770 = vmatprep.subr.bf16.mxu0 0
        %771 = vmatpush1.bf16.msra.mxu0 0
        %772 = vmatprep.subr.bf16.mxu0 0
        %773 = vmatpush1.bf16.msra.mxu0 0
        %774 = vmatprep.subr.bf16.mxu0 0
        %775 = vmatpush1.bf16.msra.mxu0 0
        %776 = vmatprep.subr.bf16.mxu0 0
        %777 = vmatpush1.bf16.msra.mxu0 0
        %778 = vmatprep.subr.bf16.mxu0 0
        %779 = vmatpush1.bf16.msra.mxu0 0
        %780 = vmatprep.subr.bf16.mxu0 0
        %781 = vmatpush1.bf16.msra.mxu0 0
        %782 = vmatprep.mubr.bf16.mxu0 0
        %783 = vmatmul.mubr.bf16.gmra.mrb[0].mxu0 %v745
        %v784 = vpop.f32.mrb[0].mxu0
        %v785 = vadd.f32 0.0, %v784
        %v786 = vpop.f32.mrb[0].mxu0
        %v787 = vpop.f32.mrb[0].mxu0
        %v788 = vpop.f32.mrb[0].mxu0
        %789 = vdwg.mxu0
        %791 = vrot.lane.b32.xlu0 %v689, 8
        %v792 = vpop.permute.xlu0 %791
        %795 = vrot.lane.b32.xlu0 %v737, 16
        %v796 = vpop.permute.xlu0 %795
        %799 = vrot.lane.b32.xlu0 %v785, 24
        %v800 = vpop.permute.xlu0 %799
        %v802 = vsel %vm355, %v641, %v792
        %vm803 = vcmask 130048
        %v804 = vsel %vm803, %v802, %v796
        %vm805 = vcmask 195584
        %v806 = vsel %vm805, %v804, %v800
        %v807 = vpack.c.bf16 %v806, %v806
        %v808 = vld [vmem:[#allocation7] sm:$0xf]
        %v809 = vld [vmem:[#allocation7 + $0x4] sm:$0xf]
        %v810 = vld [vmem:[#allocation7 + $0x8] sm:$0xf]
        %v811 = vld [vmem:[#allocation7 + $0xc] sm:$0xf]
        %v812 = vld [vmem:[%s4] sm:$0x1]
        %v814 = vlaneseq
        %v815 = vshrl.u32 %v814, 7
        %v816 = vsub.s32 0, %v815
        %v817 = vrot.slane %v812, %v816
        %v823 = vunpack.c.l.b16 %v808
        %v824 = vunpack.c.l.b16 %v809
        %v825 = vunpack.c.l.b16 %v810
        %v826 = vunpack.c.l.b16 %v811
        %v827 = vpack.c.b16 %v824, %v823
        %v828 = vpack.c.b16 %v826, %v825
        %v832 = vsel %vm294, %v807, 0
        %834 = vmatprep.subr.bf16.mxu0 0
        %835 = vmatpush1.bf16.msra.mxu0 %v827
        %836 = vmatprep.subr.bf16.mxu0 0
        %837 = vmatpush1.bf16.msra.mxu0 %v828
        %838 = vmatprep.subr.bf16.mxu0 0
        %839 = vmatpush1.bf16.msra.mxu0 0
        %840 = vmatprep.subr.bf16.mxu0 0
        %841 = vmatpush1.bf16.msra.mxu0 0
        %842 = vmatprep.subr.bf16.mxu0 0
        %843 = vmatpush1.bf16.msra.mxu0 0
        %844 = vmatprep.subr.bf16.mxu0 0
        %845 = vmatpush1.bf16.msra.mxu0 0
        %846 = vmatprep.subr.bf16.mxu0 0
        %847 = vmatpush1.bf16.msra.mxu0 0
        %848 = vmatprep.subr.bf16.mxu0 0
        %849 = vmatpush1.bf16.msra.mxu0 0
        %850 = vmatprep.subr.bf16.mxu0 0
        %851 = vmatpush1.bf16.msra.mxu0 0
        %852 = vmatprep.subr.bf16.mxu0 0
        %853 = vmatpush1.bf16.msra.mxu0 0
        %854 = vmatprep.subr.bf16.mxu0 0
        %855 = vmatpush1.bf16.msra.mxu0 0
        %856 = vmatprep.subr.bf16.mxu0 0
        %857 = vmatpush1.bf16.msra.mxu0 0
        %858 = vmatprep.subr.bf16.mxu0 0
        %859 = vmatpush1.bf16.msra.mxu0 0
        %860 = vmatprep.subr.bf16.mxu0 0
        %861 = vmatpush1.bf16.msra.mxu0 0
        %862 = vmatprep.subr.bf16.mxu0 0
        %863 = vmatpush1.bf16.msra.mxu0 0
        %864 = vmatprep.subr.bf16.mxu0 0
        %865 = vmatpush1.bf16.msra.mxu0 0
        %866 = vmatprep.mubr.bf16.mxu0 0
        %867 = vmatmul.mubr.bf16.gmra.mrb[0].mxu0 %v832
        %v868 = vpop.f32.mrb[0].mxu0
        %v869 = vadd.f32 %v817, %v868
        %v870 = vpop.f32.mrb[0].mxu0
        %v871 = vpop.f32.mrb[0].mxu0
        %v872 = vpop.f32.mrb[0].mxu0
        %873 = vdwg.mxu0
        %874 = vst.msk [vmem:[%s268] sm:$0xff] %vm294, %v869
        %s875 = sand.u32 %s141, 1
        %s876 = scalar_lea.sflag [#allocation4], %s875
        %s877 = sand.u32 %s141, 1
        %s878 = smul.addr %s877, 8
        %s879 = scalar_lea.vmem [#allocation8], %s878
        // Predicated region
        $region53: #{tpu_custom_call.1} parent=39 // pred_check
          %p880 = pneg %p151
        $region54: #{tpu_custom_call.1} parent=39 // pred_check_branch
          %882 = sbr.rel (%p880) target = $region56
        $region55: #{tpu_custom_call.1} parent=39 // pred_region
          %s884 = ssub.s32 128, 128
          %885 = vsyncadd %s876, %s884
          %s886 = smul.addr %s23, 128
          %s887 = scalar_lea.hbm %s5, %s886
          %s889 = sshll.u32 %s879, 4
          %s890 = int_to_ptr.vmem [resolvable:$true] %s889
          %892 = dma.vmem_to_hbm [thread:$0]  %s890, 128, %s887, %s876
        $region56: #{tpu_custom_call.1} parent=39 // pred_fallthru
          _
      $region40: #{tpu_custom_call.1} parent=5 // pred_fallthru
        _
      %p893 = scmp.le.s32.totalorder 2, %s18
      // Predicated region
      $region57: #{tpu_custom_call.1} parent=5 // pred_check
        %p894 = pneg %p893
      $region58: #{tpu_custom_call.1} parent=5 // pred_check_branch
        %896 = sbr.rel (%p894) target = $region60
      $region59: #{tpu_custom_call.1} parent=5 // pred_region
        %s897 = ssub.s32 %s18, 2
        // Predicated region
        $region61: #{tpu_custom_call.1} parent=59 // pred_check
          %p898 = pneg %p157
        $region62: #{tpu_custom_call.1} parent=59 // pred_check_branch
          %900 = sbr.rel (%p898) target = $region64
        $region63: #{tpu_custom_call.1} parent=59 // pred_region
          %s901 = sand.u32 %s142, 1
          %s902 = scalar_lea.sflag [#allocation4], %s901
          %s903 = sand.u32 %s142, 1
          %s904 = smul.addr %s903, 8
          %s905 = scalar_lea.vmem [#allocation8], %s904
          %906 = dma.done %s902, 128
        $region64: #{tpu_custom_call.1} parent=59 // pred_fallthru
          _
      $region60: #{tpu_custom_call.1} parent=5 // pred_fallthru
        _
    $region6: #{tpu_custom_call.1} parent=1 // loop_footer
      %s22 = sadd.s32 1, %s18
    $region7: #{tpu_custom_call.1} parent=1 // loop_footer_branch
      %17 = sbr.rel target = $region3
    $region8: #{tpu_custom_call.1} parent=1 // loop_exit
      _
    %907 = vsyncpa [#allocation3], 1
    %s908 = scalar_lea.sflag [#allocation3], 1
    %909 = vsyncpa %s908, 1
    %910 = vsyncpa [#allocation6], 1
    %911 = vsyncpa [#allocation4], 1
    %s912 = scalar_lea.sflag [#allocation4], 1
    %913 = vsyncpa %s912, 1

</llo_original>
